<compile_context>
chip_gen: v6e
topology: v6e:2x2x1
jax: 0.10.0
libtpu: 0.0.40
codegen_flags: <defaults>
</compile_context>

<pallas_src>
import functools

import jax
import jax.numpy as jnp
from jax.experimental import pallas as pl
from jax.experimental.pallas import tpu as pltpu


def _ceil_to(a, b):
    return ((a + b - 1) // b) * b


def _choose_tm(batch, tm_max=512):
    """Batch tile from a ladder: minimize dead padded rows, keep tiles large,
    and (when possible) keep >= 2 parallel tiles for v7x's 2nd TensorCore."""
    if batch <= 8:
        return batch  # single block equal to the full batch dim (always legal)
    b8 = _ceil_to(batch, 8)
    best_t, best_score = 8, None
    for t in (512, 256, 128, 64, 32, 16, 8):
        if t > tm_max:
            continue
        cover = _ceil_to(b8, t)
        n_tiles = cover // t
        waste = (cover - batch) / cover                       # dead rows (DMA'd + MXU'd)
        single_tile = 0.25 if (n_tiles < 2 and b8 >= 16) else 0.0  # v7x 2nd-TC idleness
        small_tile = {512: 0.0, 256: 0.0, 128: 0.02, 64: 0.05,
                      32: 0.12, 16: 0.25, 8: 0.40}[t]         # per-grid-step overhead
        score = waste + single_tile + small_tile
        if best_score is None or score < best_score:
            best_t, best_score = t, score
    if best_t >= batch:
        return batch
    return best_t


def _choose_tn(n_pad, tn_max=512):
    """Lane tile: multiple of 128 dividing n_pad, as large as possible."""
    if n_pad <= tn_max:
        return n_pad
    for t in range(tn_max, 0, -128):
        if n_pad % t == 0:
            return t
    return 128


# ----------------------------- kernels --------------------------------------


def _linear_single_k_kernel(x_ref, w_ref, b_ref, o_ref):
    # Whole K in one block: straight write, no accumulator, no pl.when.
    o_ref[...] = (
        jnp.dot(x_ref[...], w_ref[...], preferred_element_type=jnp.float32)
        + b_ref[...])


def _linear_multi_k_kernel(x_ref, w_ref, b_ref, o_ref):
    # Per-k weight tile; accumulate directly into the resident f32 output block.
    k = pl.program_id(2)

    @pl.when(k == 0)
    def _():
        o_ref[...] = jnp.zeros_like(o_ref)

    o_ref[...] += jnp.dot(x_ref[...], w_ref[...],
                          preferred_element_type=jnp.float32)

    @pl.when(k == pl.num_programs(2) - 1)
    def _():
        o_ref[...] += b_ref[...]


def _linear_multi_k_resident_kernel(x_ref, w_ref, b_ref, o_ref, *, tk):
    # Full [k_pad, tn] weight slab resident in VMEM; slice the K window here.
    k = pl.program_id(2)

    @pl.when(k == 0)
    def _():
        o_ref[...] = jnp.zeros_like(o_ref)

    k0 = pl.multiple_of(k * tk, tk)
    o_ref[...] += jnp.dot(x_ref[...], w_ref[pl.ds(k0, tk), :],
                          preferred_element_type=jnp.float32)

    @pl.when(k == pl.num_programs(2) - 1)
    def _():
        o_ref[...] += b_ref[...]


# ----------------------------- wrapper ---------------------------------------


def fine_tuning_head(x, weight, bias, *,
                     tm_max=512, tk=2048, tn_max=512,
                     compute_dtype=None,
                     resident_weight_bytes=4 * 1024 * 1024,
                     interpret=False):
    """Pallas TPU implementation of FineTuningHead.forward.

    Args:
      x:      [B, input_size]
      weight: [num_classes, input_size] (native PyTorch nn.Linear layout)
      bias:   [num_classes]
      compute_dtype: optional dtype for x/weight inside the matmul (e.g.
        jnp.bfloat16).  Accumulation is always f32; output is always f32.
    Returns:
      [B, num_classes] float32 logits.
    """
    B, K = x.shape
    num_classes, k_w = weight.shape
    assert k_w == K and bias.shape == (num_classes,)

    cdt = jnp.dtype(compute_dtype) if compute_dtype is not None else jnp.dtype(x.dtype)
    isz = cdt.itemsize

    # ---- tile sizes ---------------------------------------------------------
    n_pad = _ceil_to(num_classes, 128)        # lane-dense output (no vst.msk)
    tn = _choose_tn(n_pad, tn_max)
    tm = _choose_tm(B, tm_max)

    if K <= tk:
        tk_eff, k_pad, multi_k = K, K, False
    else:
        tk_eff, k_pad, multi_k = tk, _ceil_to(K, tk), True

    num_i = pl.cdiv(B, tm)
    num_j = n_pad // tn
    num_k = k_pad // tk_eff

    # ---- operand prep (every pad is skipped when already aligned) ------------
    x_c = x if x.dtype == cdt else x.astype(cdt)
    if k_pad != K:                             # only when a multi-block K remainder exists
        x_c = jnp.pad(x_c, ((0, 0), (0, k_pad - K)))

    # One-time transpose + zero-pad of the (tiny) head weight -> [k_pad, n_pad].
    w_t = weight.astype(cdt).T
    if (k_pad != K) or (n_pad != num_classes):
        w_t = jnp.pad(w_t, ((0, k_pad - K), (0, n_pad - num_classes)))

    b_p = bias.astype(jnp.float32)
    if n_pad != num_classes:
        b_p = jnp.pad(b_p, (0, n_pad - num_classes))
    b_p = b_p.reshape(1, n_pad)

    out_shape = jax.ShapeDtypeStruct((B, n_pad), jnp.float32)

    if not multi_k:
        grid = (num_i, num_j)
        in_specs = [
            pl.BlockSpec((tm, K), lambda i, j: (i, 0)),      # x
            pl.BlockSpec((K, tn), lambda i, j: (0, j)),      # weight (resident)
            pl.BlockSpec((1, tn), lambda i, j: (0, j)),      # bias
        ]
        out_spec = pl.BlockSpec((tm, tn), lambda i, j: (i, j))
        kernel = _linear_single_k_kernel
        semantics = ("parallel", "parallel")
        w_buf_bytes = 2 * K * tn * isz
    else:
        resident = (k_pad * tn * isz) <= resident_weight_bytes
        if resident:
            w_spec = pl.BlockSpec((k_pad, tn), lambda i, j, k: (0, j))
            kernel = functools.partial(_linear_multi_k_resident_kernel, tk=tk_eff)
            w_buf_bytes = 2 * k_pad * tn * isz
        else:
            w_spec = pl.BlockSpec((tk_eff, tn), lambda i, j, k: (k, j))
            kernel = _linear_multi_k_kernel
            w_buf_bytes = 2 * tk_eff * tn * isz
        grid = (num_i, num_j, num_k)
        in_specs = [
            pl.BlockSpec((tm, tk_eff), lambda i, j, k: (i, k)),   # x
            w_spec,                                               # weight
            pl.BlockSpec((1, tn), lambda i, j, k: (0, j)),        # bias
        ]
        out_spec = pl.BlockSpec((tm, tn), lambda i, j, k: (i, j))
        semantics = ("parallel", "parallel", "arbitrary")

    # Explicit VMEM budget: double-buffered x / out + weight + headroom.
    vmem_need = (2 * tm * tk_eff * isz) + w_buf_bytes + (2 * tm * tn * 4) + (2 * tn * 4)
    vmem_limit = int(min(max(int(vmem_need * 1.5) + (4 << 20), 16 << 20), 64 << 20))

    out = pl.pallas_call(
        kernel,
        out_shape=out_shape,
        grid_spec=pltpu.PrefetchScalarGridSpec(
            num_scalar_prefetch=0,
            grid=grid,
            in_specs=in_specs,
            out_specs=out_spec,
        ),
        compiler_params=pltpu.CompilerParams(
            dimension_semantics=semantics,
            vmem_limit_bytes=vmem_limit),
        interpret=interpret,
    )(x_c, w_t, b_p)

    # Only slice off lane padding when it exists (batch axis is never padded).
    if n_pad != num_classes:
        out = out[:, :num_classes]
    return out


# ----------------------------- self-test -------------------------------------

if __name__ == "__main__":
    key = jax.random.PRNGKey(0)
    k_x, k_w, k_b, k_x2, k_w2, k_b2 = jax.random.split(key, 6)

    # --- primary small shape matching the module (single-K fast path) --------
    batch, input_size, num_classes = 2, 32, 2
    x = jax.random.normal(k_x, (batch, input_size), dtype=jnp.float32)
    bound = 1.0 / jnp.sqrt(jnp.float32(input_size))
    weight = jax.random.uniform(k_w, (num_classes, input_size), dtype=jnp.float32,
                                minval=-bound, maxval=bound)
    bias = jax.random.uniform(k_b, (num_classes,), dtype=jnp.float32,
                              minval=-bound, maxval=bound)

    out = fine_tuning_head(x, weight, bias)
    jax.block_until_ready(out)
    ref = x @ weight.T + bias
    assert out.shape == (batch, num_classes)
    assert jnp.allclose(out, ref, atol=1e-5, rtol=1e-5)

    # bf16 compute path (f32 accumulator) on the same shape, looser tolerance.
    out_bf16 = fine_tuning_head(x, weight, bias, compute_dtype=jnp.bfloat16)
    jax.block_until_ready(out_bf16)
    assert jnp.allclose(out_bf16, ref, atol=3e-2, rtol=3e-2)

    # --- unaligned shape exercising multi-K accumulation, partial batch block,
    #     N lane padding and the VMEM-resident-weight path ----------------------
    B2, K2, N2 = 70, 300, 5
    x2 = jax.random.normal(k_x2, (B2, K2), dtype=jnp.float32)
    bound2 = 1.0 / jnp.sqrt(jnp.float32(K2))
    w2 = jax.random.uniform(k_w2, (N2, K2), dtype=jnp.float32,
                            minval=-bound2, maxval=bound2)
    b2 = jax.random.uniform(k_b2, (N2,), dtype=jnp.float32,
                            minval=-bound2, maxval=bound2)
    ref2 = x2 @ w2.T + b2

    out2 = fine_tuning_head(x2, w2, b2, tm_max=16, tk=128)          # resident weight
    jax.block_until_ready(out2)
    assert out2.shape == (B2, N2)
    assert jnp.allclose(out2, ref2, atol=1e-2, rtol=1e-2)

    out3 = fine_tuning_head(x2, w2, b2, tm_max=16, tk=128,
                            resident_weight_bytes=0)                # tiled weight
    jax.block_until_ready(out3)
    assert jnp.allclose(out3, ref2, atol=1e-2, rtol=1e-2)

    print("KERNEL_OK")
</pallas_src>

<mosaic_0001>
module attributes {stable_mosaic.version = 11 : i64} {
  func.func @_linear_single_k_kernel(%arg0: i32, %arg1: i32, %arg2: memref<2x32xf32, #tpu.memory_space<vmem>>, %arg3: memref<32x128xf32, #tpu.memory_space<vmem>>, %arg4: memref<1x128xf32, #tpu.memory_space<vmem>>, %arg5: memref<2x128xf32, #tpu.memory_space<vmem>>) attributes {dimension_semantics = [#tpu.dimension_semantics<parallel>, #tpu.dimension_semantics<parallel>], iteration_bounds = array<i64: 1, 1>, scalar_prefetch = 0 : i64, scratch_operands = 0 : i64, tpu.core_type = #tpu.core_type<tc>, window_params = [{transform_indices = @transform_0, window_bounds = array<i64: 2, 32>}, {transform_indices = @transform_1, window_bounds = array<i64: 32, 128>}, {transform_indices = @transform_2, window_bounds = array<i64: 1, 128>}, {transform_indices = @transform_3, window_bounds = array<i64: 2, 128>}]} {
    %c0 = arith.constant 0 : index
    %c0_0 = arith.constant 0 : index
    %0 = vector.load %arg2[%c0, %c0_0] : memref<2x32xf32, #tpu.memory_space<vmem>>, vector<2x32xf32>
    %c0_1 = arith.constant 0 : index
    %c0_2 = arith.constant 0 : index
    %1 = vector.load %arg3[%c0_1, %c0_2] : memref<32x128xf32, #tpu.memory_space<vmem>>, vector<32x128xf32>
    %cst = arith.constant dense<0.000000e+00> : vector<2x128xf32>
    %2 = tpu.matmul %0, %1, %cst {dimension_numbers = #tpu.dot_dimension_numbers<[1], [0], [0], [1], [0, 0, 1, 1], [], []>} : vector<2x32xf32>, vector<32x128xf32>, vector<2x128xf32> -> vector<2x128xf32>
    %c0_3 = arith.constant 0 : index
    %c0_4 = arith.constant 0 : index
    %3 = vector.load %arg4[%c0_3, %c0_4] : memref<1x128xf32, #tpu.memory_space<vmem>>, vector<1x128xf32>
    %4 = vector.broadcast %3 : vector<1x128xf32> to vector<2x128xf32>
    %5 = arith.addf %2, %4 : vector<2x128xf32>
    %c0_5 = arith.constant 0 : index
    %c0_6 = arith.constant 0 : index
    %6 = vector.load %arg5[%c0_5, %c0_6] : memref<2x128xf32, #tpu.memory_space<vmem>>, vector<2x128xf32>
    tpu.vector_store %arg5[%c0_5, %c0_6], %5 {strides = array<i32>} : memref<2x128xf32, #tpu.memory_space<vmem>>, vector<2x128xf32>,
    return
  }
  func.func @transform_0(%arg0: i32, %arg1: i32) -> (i32, i32) {
    %c0_i32 = arith.constant 0 : i32
    %c0_i32_0 = arith.constant 0 : i32
    return %arg0, %c0_i32 : i32, i32
  }
  func.func @transform_1(%arg0: i32, %arg1: i32) -> (i32, i32) {
    %c0_i32 = arith.constant 0 : i32
    %c0_i32_0 = arith.constant 0 : i32
    return %c0_i32, %arg1 : i32, i32
  }
  func.func @transform_2(%arg0: i32, %arg1: i32) -> (i32, i32) {
    %c0_i32 = arith.constant 0 : i32
    %c0_i32_0 = arith.constant 0 : i32
    return %c0_i32, %arg1 : i32, i32
  }
  func.func @transform_3(%arg0: i32, %arg1: i32) -> (i32, i32) {
    %c0_i32 = arith.constant 0 : i32
    return %arg0, %arg1 : i32, i32
  }
}

</mosaic_0001>

<llo_original>
// kernel: tpu_custom_call.1
$region0: #{tpu_custom_call.1}
  #allocation0 [shape = 'u32[]', space=smem, size = 0x4, offset = 0x4, fixed_abs, tag = 'smem constant byte address 0x4 - core index']
  #allocation1 [shape = 'u32[144,128]{1,0:T(1,128)}', space=vmem, size = 0x12000, scoped, tag = 'internal scratch']
  %s0 = inlined_call_operand.hbm [shape: f32[2,32], index: 0, kind: input, shape index: {}]
  %s1 = inlined_call_operand.hbm [shape: f32[32,128], index: 1, kind: input, shape index: {}]
  %s2 = inlined_call_operand.vmem [shape: f32[1,128], index: 2, kind: input, shape index: {}]
  %s3 = inlined_call_operand.hbm [shape: f32[2,128], index: 3, kind: output, shape index: {}]
  %s4 = sld [smem:[#allocation0]]
  $region30: #{tpu_custom_call.1} parent=0
    _
  %s6 = ssub.s32 1, %s4
  %s7 = scalar_select 0, %s6, %s4
  $region1: #{tpu_custom_call.1} parent=0
    #allocation2 [shape = 'u8[1024]{0}', space=vmem, size = 0x400, scoped, tag = 'input window, operand 0, single buffered']
    #allocation3 [shape = 's32[1]{0}', space=sflag, size = 0x4, scoped, tag = 'scoped memory for tpu_custom_call.1']
    #allocation4 [shape = 's32[1]{0}', space=sflag, size = 0x4, scoped, tag = 'scoped memory for tpu_custom_call.1']
    #allocation5 [shape = 'u8[16384]{0}', space=vmem, size = 0x4000, scoped, tag = 'input window, operand 1, single buffered']
    #allocation6 [shape = 's32[1]{0}', space=sflag, size = 0x4, scoped, tag = 'scoped memory for tpu_custom_call.1']
    #allocation7 [shape = 'u8[1024]{0}', space=vmem, size = 0x400, scoped, tag = 'output window, operand 0, single buffered']
    %8 = vsyncpa [#allocation3], 0
    %9 = vsyncpa [#allocation6], 0
    %10 = vsyncpa [#allocation4], 0
    // Predicated region
    $region2: #{tpu_custom_call.1} parent=1 // pred_check
      _
    $region3: #{tpu_custom_call.1} parent=1 // pred_check_branch
      %12 = sbr.rel (0) target = $region5
    $region4: #{tpu_custom_call.1} parent=1 // pred_region
      %s14 = ssub.s32 32, 32
      %15 = vsyncadd [#allocation3], %s14
      %s17 = sshll.u32 [#allocation2], 4
      %s18 = int_to_ptr.vmem [resolvable:$true] %s17
      %20 = dma.hbm_to_vmem [thread:$0]  %s0, 32, %s18, [#allocation3]
    $region5: #{tpu_custom_call.1} parent=1 // pred_fallthru
      _
    // Predicated region
    $region6: #{tpu_custom_call.1} parent=1 // pred_check
      _
    $region7: #{tpu_custom_call.1} parent=1 // pred_check_branch
      %22 = sbr.rel (0) target = $region9
    $region8: #{tpu_custom_call.1} parent=1 // pred_region
      %s24 = ssub.s32 512, 512
      %25 = vsyncadd [#allocation6], %s24
      %s26 = sshll.u32 [#allocation5], 4
      %s27 = int_to_ptr.vmem [resolvable:$true] %s26
      %32 = dma.hbm_to_vmem [thread:$0]  %s1, 512, %s27, [#allocation6], 128, 128, 8
    $region9: #{tpu_custom_call.1} parent=1 // pred_fallthru
      _
    // Predicated region
    $region10: #{tpu_custom_call.1} parent=1 // pred_check
      _
    $region11: #{tpu_custom_call.1} parent=1 // pred_check_branch
      %34 = sbr.rel (0) target = $region13
    $region12: #{tpu_custom_call.1} parent=1 // pred_region
      _
    $region13: #{tpu_custom_call.1} parent=1 // pred_fallthru
      _
    // Predicated region
    $region14: #{tpu_custom_call.1} parent=1 // pred_check
      _
    $region15: #{tpu_custom_call.1} parent=1 // pred_check_branch
      %36 = sbr.rel (0) target = $region17
    $region16: #{tpu_custom_call.1} parent=1 // pred_region
      %37 = dma.done [#allocation3], 32
    $region17: #{tpu_custom_call.1} parent=1 // pred_fallthru
      _
    // Predicated region
    $region18: #{tpu_custom_call.1} parent=1 // pred_check
      _
    $region19: #{tpu_custom_call.1} parent=1 // pred_check_branch
      %39 = sbr.rel (0) target = $region21
    $region20: #{tpu_custom_call.1} parent=1 // pred_region
      %40 = dma.done [#allocation6], 512
    $region21: #{tpu_custom_call.1} parent=1 // pred_fallthru
      _
    %v41 = vld [vmem:[#allocation2] sm:$0x3]
    %v42 = vld [vmem:[#allocation5] sm:$0xff]
    %v43 = vld [vmem:[#allocation5 + $0x8] sm:$0xff]
    %v44 = vld [vmem:[#allocation5 + $0x10] sm:$0xff]
    %v45 = vld [vmem:[#allocation5 + $0x18] sm:$0xff]
    %v46 = vld [vmem:[%s2] sm:$0x1]
    %v48 = vlaneseq
    %v49 = vshrl.u32 %v48, 7
    %v50 = vsub.s32 0, %v49
    %v51 = vrot.slane %v46, %v50
    %vm53 = vcmask 261120
    %v55 = vsel %vm53, %v41, 0
    %57 = vmatprep.subr.mxu0 0.0
    %58 = vmatpush1.msra.mxu0 0.0
    %59 = vmatprep.subr.mxu0 0.0
    %60 = vmatpush1.msra.mxu0 0.0
    %61 = vmatprep.subr.mxu0 0.0
    %62 = vmatpush1.msra.mxu0 0.0
    %63 = vmatprep.subr.mxu0 0.0
    %64 = vmatpush1.msra.mxu0 0.0
    %65 = vmatprep.subr.mxu0 0.0
    %66 = vmatpush1.msra.mxu0 0.0
    %67 = vmatprep.subr.mxu0 0.0
    %68 = vmatpush1.msra.mxu0 0.0
    %69 = vmatprep.subr.mxu0 0.0
    %70 = vmatpush1.msra.mxu0 0.0
    %71 = vmatprep.subr.mxu0 0.0
    %72 = vmatpush1.msra.mxu0 0.0
    %73 = vmatprep.subr.mxu0 0.0
    %74 = vmatpush1.msra.mxu0 0.0
    %75 = vmatprep.subr.mxu0 0.0
    %76 = vmatpush1.msra.mxu0 0.0
    %77 = vmatprep.subr.mxu0 0.0
    %78 = vmatpush1.msra.mxu0 0.0
    %79 = vmatprep.subr.mxu0 0.0
    %80 = vmatpush1.msra.mxu0 0.0
    %81 = vmatprep.subr.mxu0 0.0
    %82 = vmatpush1.msra.mxu0 %v45
    %83 = vmatprep.subr.mxu0 0.0
    %84 = vmatpush1.msra.mxu0 %v44
    %85 = vmatprep.subr.mxu0 0.0
    %86 = vmatpush1.msra.mxu0 %v43
    %87 = vmatprep.subr.mxu0 0.0
    %88 = vmatpush1.msra.mxu0 %v42
    %89 = vmatprep.subr.mxu0 0.0
    %90 = vmatpush2.msra.mxu0 0.0
    %91 = vmatprep.subr.mxu0 0.0
    %92 = vmatpush2.msra.mxu0 0.0
    %93 = vmatprep.subr.mxu0 0.0
    %94 = vmatpush2.msra.mxu0 0.0
    %95 = vmatprep.subr.mxu0 0.0
    %96 = vmatpush2.msra.mxu0 0.0
    %97 = vmatprep.subr.mxu0 0.0
    %98 = vmatpush2.msra.mxu0 0.0
    %99 = vmatprep.subr.mxu0 0.0
    %100 = vmatpush2.msra.mxu0 0.0
    %101 = vmatprep.subr.mxu0 0.0
    %102 = vmatpush2.msra.mxu0 0.0
    %103 = vmatprep.subr.mxu0 0.0
    %104 = vmatpush2.msra.mxu0 0.0
    %105 = vmatprep.subr.mxu0 0.0
    %106 = vmatpush2.msra.mxu0 0.0
    %107 = vmatprep.subr.mxu0 0.0
    %108 = vmatpush2.msra.mxu0 0.0
    %109 = vmatprep.subr.mxu0 0.0
    %110 = vmatpush2.msra.mxu0 0.0
    %111 = vmatprep.subr.mxu0 0.0
    %112 = vmatpush2.msra.mxu0 0.0
    %113 = vmatprep.subr.mxu0 0.0
    %114 = vmatpush2.msra.mxu0 0.0
    %115 = vmatprep.subr.mxu0 0.0
    %116 = vmatpush2.msra.mxu0 0.0
    %117 = vmatprep.subr.mxu0 0.0
    %118 = vmatpush2.msra.mxu0 0.0
    %119 = vmatprep.subr.mxu0 0.0
    %120 = vmatpush2.msra.mxu0 0.0
    %121 = vmatprep.mubr.f32.mxu0 0.0
    %122 = vmatmul.mubr.f32.gmra.mxu0 %v55
    %v123 = vpop.f32.mrf.mxu0
    %v124 = vadd.f32 %v51, %v123
    %v125 = vpop.f32.mrf.mxu0
    %126 = vdwg.mxu0
    %127 = vst [vmem:[#allocation7] sm:$0x3] %v124
    // Predicated region
    $region22: #{tpu_custom_call.1} parent=1 // pred_check
      _
    $region23: #{tpu_custom_call.1} parent=1 // pred_check_branch
      %129 = sbr.rel (0) target = $region25
    $region24: #{tpu_custom_call.1} parent=1 // pred_region
      %s131 = ssub.s32 32, 32
      %132 = vsyncadd [#allocation4], %s131
      %s134 = sshll.u32 [#allocation7], 4
      %s135 = int_to_ptr.vmem [resolvable:$true] %s134
      %137 = dma.vmem_to_hbm [thread:$0]  %s135, 32, %s3, [#allocation4]
    $region25: #{tpu_custom_call.1} parent=1 // pred_fallthru
      _
    // Predicated region
    $region26: #{tpu_custom_call.1} parent=1 // pred_check
      _
    $region27: #{tpu_custom_call.1} parent=1 // pred_check_branch
      %139 = sbr.rel (0) target = $region29
    $region28: #{tpu_custom_call.1} parent=1 // pred_region
      %140 = dma.done [#allocation4], 32
    $region29: #{tpu_custom_call.1} parent=1 // pred_fallthru
      _
    %141 = vsyncpa [#allocation3], 1
    %142 = vsyncpa [#allocation6], 1
    %143 = vsyncpa [#allocation4], 1

</llo_original>
